<compile_context>
chip_gen: v5e
topology: v5e:2x2
jax: 0.10.0
libtpu: 0.0.40
codegen_flags: <defaults>
</compile_context>

<pallas_src>
import functools

import jax
import jax.numpy as jnp
from jax.experimental import pallas as pl
from jax.experimental.pallas import tpu as pltpu


def _round_up(a, b):
    return ((a + b - 1) // b) * b


# ---------------------------------------------------------------------------
# Kernels
# ---------------------------------------------------------------------------

def _conv1d_acc_kernel(x_ref, w_ref, b_ref, o_ref, acc_ref, *, compute_dtype):
    """General path. grid = (M tiles, N tiles, K tiles); K (last axis) reduces."""

    @pl.when(pl.program_id(2) == 0)
    def _init():
        # Fold the bias into the accumulator init so the finalize step is a
        # pure cast + store.
        acc_ref[...] = jnp.broadcast_to(
            b_ref[...].astype(jnp.float32), acc_ref.shape
        )

    x = x_ref[...]
    w = w_ref[...]
    if compute_dtype is not None:
        x = x.astype(compute_dtype)
        w = w.astype(compute_dtype)
    acc_ref[...] += jnp.dot(x, w, preferred_element_type=jnp.float32)

    @pl.when(pl.program_id(2) == pl.num_programs(2) - 1)
    def _finalize():
        o_ref[...] = acc_ref[...].astype(o_ref.dtype)


def _conv1d_ws_kernel(x_ref, w_ref, b_ref, o_ref, *, compute_dtype):
    """Weight-stationary path. grid = (M tiles, N column tiles); full K."""
    x = x_ref[...]
    w = w_ref[...]
    if compute_dtype is not None:
        x = x.astype(compute_dtype)
        w = w.astype(compute_dtype)
    acc = jnp.dot(x, w, preferred_element_type=jnp.float32)
    o_ref[...] = (acc + b_ref[...].astype(jnp.float32)).astype(o_ref.dtype)


# ---------------------------------------------------------------------------
# Wrapper
# ---------------------------------------------------------------------------

def conv1d(x, weight, bias, *, tm=None, tn=None, tk=None,
           compute_dtype=None, force_general=False):
    """y[..., nf] = x[..., nx] @ weight[nx, nf] + bias[nf]  (torch addmm semantics)."""
    nx, nf = weight.shape
    assert x.shape[-1] == nx
    size_out = x.shape[:-1] + (nf,)

    x2d = x.reshape(-1, nx)                      # (M, K)
    M, K = x2d.shape
    N = nf

    out_dtype = x.dtype
    x_isz = jnp.dtype(x.dtype).itemsize
    w_isz = jnp.dtype(weight.dtype).itemsize
    b_isz = jnp.dtype(bias.dtype).itemsize
    out_isz = jnp.dtype(out_dtype).itemsize

    # ---- generation-aware VMEM budgets ------------------------------------
    try:
        vmem_cap = int(pltpu.get_tpu_info().vmem_capacity_bytes)
    except Exception:
        vmem_cap = 64 * 1024 * 1024              # conservative (v7x per-TC)
    if vmem_cap >= 100 * 1024 * 1024:            # v5e / v6e: 128 MiB VMEM
        vmem_limit = 96 * 1024 * 1024
        ws_budget = 80 * 1024 * 1024
        big_vmem = True
    else:                                        # v7x: 64 MiB per TensorCore
        vmem_limit = 40 * 1024 * 1024
        ws_budget = 28 * 1024 * 1024
        big_vmem = False

    # ---- M tile (sublane-pack aligned for sub-32-bit dtypes) ---------------
    pack = max(8, 32 // out_isz)                 # 8 f32, 16 bf16, 32 int8/fp8
    tm_default = _round_up(512 if big_vmem else 256, pack)
    if tm is None:
        tm = tm_default if M > tm_default else M  # full-dim block for small M
    else:
        tm = min(tm, M)
    m_tiles = pl.cdiv(M, tm)

    b2d = bias.reshape(1, N)
    user_tiled = (tn is not None) or (tk is not None)

    # ========================================================================
    # Weight-stationary fast path: no K grid / accumulator, weight read once
    # (or once per M tile when column-tiled for small-M DMA/compute overlap).
    # ========================================================================
    if not (force_general or user_tiled):
        if m_tiles >= 4:
            tn_ws = N                            # whole weight resident
        else:
            # Small M (decode-style): tile N so weight-column DMA pipelines
            # against compute and both v7x TensorCores get grid steps.
            tn_ws = N if N <= 1024 else 1024
        n_tiles_ws = pl.cdiv(N, tn_ws)
        w_bufs = 1 if n_tiles_ws == 1 else 2     # grid-invariant -> 1 buffer
        ws_bytes = (w_bufs * K * tn_ws * w_isz
                    + w_bufs * tn_ws * b_isz
                    + 2 * tm * K * x_isz
                    + 2 * tm * tn_ws * out_isz
                    + tm * tn_ws * 4)            # f32 dot intermediate
        if ws_bytes <= ws_budget:
            pipe = ({"pipeline_mode": pl.Buffered(1)}
                    if n_tiles_ws == 1 else {})
            cost = pl.CostEstimate(
                flops=2 * M * N * K,
                transcendentals=0,
                bytes_accessed=(M * K * x_isz
                                + K * N * w_isz
                                * (1 if n_tiles_ws == 1 else m_tiles)
                                + N * b_isz
                                + M * N * out_isz),
            )
            out = pl.pallas_call(
                functools.partial(_conv1d_ws_kernel,
                                  compute_dtype=compute_dtype),
                out_shape=jax.ShapeDtypeStruct((M, N), out_dtype),
                grid_spec=pltpu.PrefetchScalarGridSpec(
                    num_scalar_prefetch=0,
                    grid=(m_tiles, n_tiles_ws),
                    in_specs=[
                        pl.BlockSpec((tm, K), lambda i, j: (i, 0)),        # x
                        pl.BlockSpec((K, tn_ws), lambda i, j: (0, j),
                                     **pipe),                              # W
                        pl.BlockSpec((1, tn_ws), lambda i, j: (0, j),
                                     **pipe),                              # b
                    ],
                    out_specs=pl.BlockSpec((tm, tn_ws), lambda i, j: (i, j)),
                ),
                compiler_params=pltpu.CompilerParams(
                    dimension_semantics=("parallel", "parallel"),
                    vmem_limit_bytes=vmem_limit,
                ),
                cost_estimate=cost,
            )(x2d, weight, b2d)
            return out.reshape(size_out)

    # ========================================================================
    # General path: (M, N, K) grid with f32 VMEM accumulator.
    # ========================================================================
    tn_ = tn if tn is not None else (1024 if big_vmem else 512)
    tn_ = min(tn_, N)
    if tn_ < N:
        tn_ = max(128, (tn_ // 128) * 128)       # lane-dense tile
    tk_default = 1024 if x_isz <= 2 else 512
    tk_ = tk if tk is not None else (tk_default if big_vmem
                                     else min(tk_default, 512))
    tk_ = min(tk_, K)
    if tk_ < K:
        tk_ = max(128, (tk_ // 128) * 128)

    # Only the reduction axis needs zero padding; partial trailing M / N
    # blocks are handled (masked) by Pallas at zero extra HBM cost.
    K_pad = _round_up(K, tk_)
    w2d = weight
    if K_pad != K:
        x2d = jnp.pad(x2d, ((0, 0), (0, K_pad - K)))
        # NOTE: callers that reuse the same weight across many steps should
        # pre-pad K once outside this wrapper to avoid a per-call HBM pass.
        w2d = jnp.pad(weight, ((0, K_pad - K), (0, 0)))

    n_tiles = pl.cdiv(N, tn_)
    k_tiles = K_pad // tk_

    cost = pl.CostEstimate(
        flops=2 * M * N * K_pad,
        transcendentals=0,
        bytes_accessed=(M * K_pad * x_isz * n_tiles      # x re-read per N tile
                        + K_pad * N * w_isz * m_tiles    # W re-read per M tile
                        + N * b_isz
                        + M * N * out_isz),
    )

    out = pl.pallas_call(
        functools.partial(_conv1d_acc_kernel, compute_dtype=compute_dtype),
        out_shape=jax.ShapeDtypeStruct((M, N), out_dtype),
        grid_spec=pltpu.PrefetchScalarGridSpec(
            num_scalar_prefetch=0,
            grid=(m_tiles, n_tiles, k_tiles),
            in_specs=[
                pl.BlockSpec((tm, tk_), lambda i, j, k: (i, k)),   # x
                pl.BlockSpec((tk_, tn_), lambda i, j, k: (k, j)),  # weight
                pl.BlockSpec((1, tn_), lambda i, j, k: (0, j)),    # bias
            ],
            out_specs=pl.BlockSpec((tm, tn_), lambda i, j, k: (i, j)),
            scratch_shapes=[pltpu.VMEM((tm, tn_), jnp.float32)],
        ),
        compiler_params=pltpu.CompilerParams(
            dimension_semantics=("parallel", "parallel", "arbitrary"),
            vmem_limit_bytes=vmem_limit,
        ),
        cost_estimate=cost,
    )(x2d, w2d, b2d)
    return out.reshape(size_out)


if __name__ == "__main__":
    key = jax.random.PRNGKey(0)
    k1, k2, k3, k4, k5 = jax.random.split(key, 5)

    # ---- Case 1: module-shaped demo: Conv1D(nf=64, nx=32), x = (2, 8, 32) ----
    nx, nf = 32, 64
    B, T = 2, 8
    weight = 0.02 * jax.random.normal(k1, (nx, nf), dtype=jnp.float32)
    bias = jnp.zeros((nf,), dtype=jnp.float32)          # module init: zeros
    x = jax.random.normal(k2, (B, T, nx), dtype=jnp.float32)
    y_ref = (x.reshape(-1, nx) @ weight + bias).reshape(B, T, nf)

    y = jax.block_until_ready(conv1d(x, weight, bias))  # WS fast path
    assert y.shape == (B, T, nf)
    assert jnp.allclose(y, y_ref, atol=5e-3, rtol=5e-3)

    # ---- Case 2: general (K-tiled accumulator) path, non-divisible M/N/K ----
    nx2, nf2 = 200, 192
    B2, T2 = 2, 20                                      # M = 40
    w2 = 0.02 * jax.random.normal(k3, (nx2, nf2), dtype=jnp.float32)
    b2 = 0.1 * jax.random.normal(k4, (nf2,), dtype=jnp.float32)
    x2 = jax.random.normal(k5, (B2, T2, nx2), dtype=jnp.float32)
    y2_ref = (x2.reshape(-1, nx2) @ w2 + b2).reshape(B2, T2, nf2)

    y2 = jax.block_until_ready(
        conv1d(x2, w2, b2, tm=32, tn=128, tk=128, force_general=True))
    assert y2.shape == (B2, T2, nf2)
    assert jnp.allclose(y2, y2_ref, atol=1e-2, rtol=1e-2)

    # ---- Case 3: opt-in bf16 compute knob (f32 accumulation) ----
    y3 = jax.block_until_ready(conv1d(x, weight, bias,
                                      compute_dtype=jnp.bfloat16))
    assert jnp.allclose(y3, y_ref, atol=2e-2, rtol=2e-2)

    print("KERNEL_OK")
</pallas_src>

<mosaic_0001>
module attributes {stable_mosaic.version = 11 : i64} {
  func.func @_conv1d_ws_kernel(%arg0: i32, %arg1: i32, %arg2: memref<16x32xf32, #tpu.memory_space<vmem>>, %arg3: memref<32x64xf32, #tpu.memory_space<vmem>>, %arg4: memref<1x64xf32, #tpu.memory_space<vmem>>, %arg5: memref<16x64xf32, #tpu.memory_space<vmem>>) attributes {dimension_semantics = [#tpu.dimension_semantics<parallel>, #tpu.dimension_semantics<parallel>], iteration_bounds = array<i64: 1, 1>, scalar_prefetch = 0 : i64, scratch_operands = 0 : i64, tpu.core_type = #tpu.core_type<tc>, window_params = [{transform_indices = @transform_0, window_bounds = array<i64: 16, 32>}, {pipeline_mode = #tpu.pipeline_mode<synchronous>, transform_indices = @transform_1, window_bounds = array<i64: 32, 64>}, {pipeline_mode = #tpu.pipeline_mode<synchronous>, transform_indices = @transform_2, window_bounds = array<i64: 1, 64>}, {transform_indices = @transform_3, window_bounds = array<i64: 16, 64>}]} {
    %c0 = arith.constant 0 : index
    %c0_0 = arith.constant 0 : index
    %0 = vector.load %arg2[%c0, %c0_0] : memref<16x32xf32, #tpu.memory_space<vmem>>, vector<16x32xf32>
    %c0_1 = arith.constant 0 : index
    %c0_2 = arith.constant 0 : index
    %1 = vector.load %arg3[%c0_1, %c0_2] : memref<32x64xf32, #tpu.memory_space<vmem>>, vector<32x64xf32>
    %cst = arith.constant dense<0.000000e+00> : vector<16x64xf32>
    %2 = tpu.matmul %0, %1, %cst {dimension_numbers = #tpu.dot_dimension_numbers<[1], [0], [0], [1], [0, 0, 1, 1], [], []>} : vector<16x32xf32>, vector<32x64xf32>, vector<16x64xf32> -> vector<16x64xf32>
    %c0_3 = arith.constant 0 : index
    %c0_4 = arith.constant 0 : index
    %3 = vector.load %arg4[%c0_3, %c0_4] : memref<1x64xf32, #tpu.memory_space<vmem>>, vector<1x64xf32>
    %4 = vector.broadcast %3 : vector<1x64xf32> to vector<16x64xf32>
    %5 = arith.addf %2, %4 : vector<16x64xf32>
    %c0_5 = arith.constant 0 : index
    %c0_6 = arith.constant 0 : index
    %6 = vector.load %arg5[%c0_5, %c0_6] : memref<16x64xf32, #tpu.memory_space<vmem>>, vector<16x64xf32>
    tpu.vector_store %arg5[%c0_5, %c0_6], %5 {strides = array<i32>} : memref<16x64xf32, #tpu.memory_space<vmem>>, vector<16x64xf32>,
    return
  }
  func.func @transform_0(%arg0: i32, %arg1: i32) -> (i32, i32) {
    %c0_i32 = arith.constant 0 : i32
    %c0_i32_0 = arith.constant 0 : i32
    return %arg0, %c0_i32 : i32, i32
  }
  func.func @transform_1(%arg0: i32, %arg1: i32) -> (i32, i32) {
    %c0_i32 = arith.constant 0 : i32
    %c0_i32_0 = arith.constant 0 : i32
    return %c0_i32, %arg1 : i32, i32
  }
  func.func @transform_2(%arg0: i32, %arg1: i32) -> (i32, i32) {
    %c0_i32 = arith.constant 0 : i32
    %c0_i32_0 = arith.constant 0 : i32
    return %c0_i32, %arg1 : i32, i32
  }
  func.func @transform_3(%arg0: i32, %arg1: i32) -> (i32, i32) {
    %c0_i32 = arith.constant 0 : i32
    return %arg0, %arg1 : i32, i32
  }
}

</mosaic_0001>

<llo_original>
// kernel: tpu_custom_call.1
$region0: #{tpu_custom_call.1}
  #allocation0 [shape = 'u32[]', space=smem, size = 0x4, offset = 0x4, fixed_abs, tag = 'smem constant byte address 0x4 - core index']
  #allocation1 [shape = 'u32[72,128]{1,0:T(1,128)}', space=vmem, size = 0x9000, scoped, tag = 'internal scratch']
  %s0 = inlined_call_operand.hbm [shape: f32[16,32], index: 0, kind: input, shape index: {}]
  %s1 = inlined_call_operand.hbm [shape: f32[32,64], index: 1, kind: input, shape index: {}]
  %s2 = inlined_call_operand.vmem [shape: f32[1,64], index: 2, kind: input, shape index: {}]
  %s3 = inlined_call_operand.hbm [shape: f32[16,64], index: 3, kind: output, shape index: {}]
  %s4 = sld [smem:[#allocation0]]
  $region30: #{tpu_custom_call.1} parent=0
    _
  %s6 = ssub.s32 1, %s4
  %s7 = scalar_select 0, %s6, %s4
  $region1: #{tpu_custom_call.1} parent=0
    #allocation2 [shape = 'u8[8192]{0}', space=vmem, size = 0x2000, scoped, tag = 'input window, operand 0, single buffered']
    #allocation3 [shape = 's32[1]{0}', space=sflag, size = 0x4, scoped, tag = 'scoped memory for tpu_custom_call.1']
    #allocation4 [shape = 's32[1]{0}', space=sflag, size = 0x4, scoped, tag = 'scoped memory for tpu_custom_call.1']
    #allocation5 [shape = 'u8[16384]{0}', space=vmem, size = 0x4000, scoped, tag = 'input window, operand 1, single buffered']
    #allocation6 [shape = 's32[1]{0}', space=sflag, size = 0x4, scoped, tag = 'scoped memory for tpu_custom_call.1']
    #allocation7 [shape = 'u8[8192]{0}', space=vmem, size = 0x2000, scoped, tag = 'output window, operand 0, single buffered']
    %8 = vsyncpa [#allocation3], 0
    %9 = vsyncpa [#allocation6], 0
    %10 = vsyncpa [#allocation4], 0
    // Predicated region
    $region2: #{tpu_custom_call.1} parent=1 // pred_check
      _
    $region3: #{tpu_custom_call.1} parent=1 // pred_check_branch
      %12 = sbr.rel (0) target = $region5
    $region4: #{tpu_custom_call.1} parent=1 // pred_region
      %14 = vsyncadd [#allocation3], 0
      %s15 = sshll.u32 %s0, 4
      %s16 = int_to_ptr.hbm [resolvable:$true] %s15
      %s17 = sshll.u32 [#allocation2], 4
      %s18 = int_to_ptr.vmem [resolvable:$true] %s17
      %23 = dma.hbm_to_vmem [thread:$0]  %s16, 256, %s18, [#allocation3], 128, 128, 8
    $region5: #{tpu_custom_call.1} parent=1 // pred_fallthru
      _
    // Predicated region
    $region6: #{tpu_custom_call.1} parent=1 // pred_check
      _
    $region7: #{tpu_custom_call.1} parent=1 // pred_check_branch
      %25 = sbr.rel (0) target = $region9
    $region8: #{tpu_custom_call.1} parent=1 // pred_region
      %27 = vsyncadd [#allocation6], 0
      %s28 = sshll.u32 %s1, 4
      %s29 = int_to_ptr.hbm [resolvable:$true] %s28
      %s30 = sshll.u32 [#allocation5], 4
      %s31 = int_to_ptr.vmem [resolvable:$true] %s30
      %36 = dma.hbm_to_vmem [thread:$0]  %s29, 512, %s31, [#allocation6], 128, 128, 8
    $region9: #{tpu_custom_call.1} parent=1 // pred_fallthru
      _
    // Predicated region
    $region10: #{tpu_custom_call.1} parent=1 // pred_check
      _
    $region11: #{tpu_custom_call.1} parent=1 // pred_check_branch
      %38 = sbr.rel (0) target = $region13
    $region12: #{tpu_custom_call.1} parent=1 // pred_region
      _
    $region13: #{tpu_custom_call.1} parent=1 // pred_fallthru
      _
    // Predicated region
    $region14: #{tpu_custom_call.1} parent=1 // pred_check
      _
    $region15: #{tpu_custom_call.1} parent=1 // pred_check_branch
      %40 = sbr.rel (0) target = $region17
    $region16: #{tpu_custom_call.1} parent=1 // pred_region
      %42 = dma.done [#allocation3], 256
    $region17: #{tpu_custom_call.1} parent=1 // pred_fallthru
      _
    // Predicated region
    $region18: #{tpu_custom_call.1} parent=1 // pred_check
      _
    $region19: #{tpu_custom_call.1} parent=1 // pred_check_branch
      %44 = sbr.rel (0) target = $region21
    $region20: #{tpu_custom_call.1} parent=1 // pred_region
      %46 = dma.done [#allocation6], 512
    $region21: #{tpu_custom_call.1} parent=1 // pred_fallthru
      _
    %v47 = vld [vmem:[#allocation2] sm:$0xff]
    %v48 = vld [vmem:[#allocation2 + $0x8] sm:$0xff]
    %v49 = vld [vmem:[#allocation5] sm:$0xff]
    %v50 = vld [vmem:[#allocation5 + $0x8] sm:$0xff]
    %v51 = vld [vmem:[#allocation5 + $0x10] sm:$0xff]
    %v52 = vld [vmem:[#allocation5 + $0x18] sm:$0xff]
    %v53 = vld [vmem:[%s2] sm:$0x1]
    %v55 = vperm.slane %v53, 0
    %vm57 = vcmask 261120
    %v59 = vsel %vm57, %v47, 0
    %v62 = vsel %vm57, %v48, 0
    %64 = vmatpush.msra.mxu0 0.0
    %65 = vmatpush.msra.mxu0 0.0
    %66 = vmatpush.msra.mxu0 0.0
    %67 = vmatpush.msra.mxu0 0.0
    %68 = vmatpush.msra.mxu0 0.0
    %69 = vmatpush.msra.mxu0 0.0
    %70 = vmatpush.msra.mxu0 0.0
    %71 = vmatpush.msra.mxu0 0.0
    %72 = vmatpush.msra.mxu0 0.0
    %73 = vmatpush.msra.mxu0 0.0
    %74 = vmatpush.msra.mxu0 0.0
    %75 = vmatpush.msra.mxu0 0.0
    %76 = vmatpush.msra.mxu0 %v52
    %77 = vmatpush.msra.mxu0 %v51
    %78 = vmatpush.msra.mxu0 %v50
    %79 = vmatpush.msra.mxu0 %v49
    %80 = vmatmul.f32.gmra.mxu0 %v59
    %v81 = vpop.f32.mrf.mxu0
    %v82 = vadd.f32 %v55, %v81
    %83 = vmatmul.f32.gmra.mxu0 %v62
    %v84 = vpop.f32.mrf.mxu0
    %v85 = vadd.f32 %v55, %v84
    %86 = vdwg.mxu0
    %vm87 = vcmask 523264
    %88 = vst.msk [vmem:[#allocation7] sm:$0xff] %vm87, %v82
    %89 = vst.msk [vmem:[#allocation7 + $0x8] sm:$0xff] %vm87, %v85
    // Predicated region
    $region22: #{tpu_custom_call.1} parent=1 // pred_check
      _
    $region23: #{tpu_custom_call.1} parent=1 // pred_check_branch
      %91 = sbr.rel (0) target = $region25
    $region24: #{tpu_custom_call.1} parent=1 // pred_region
      %93 = vsyncadd [#allocation4], 0
      %s94 = sshll.u32 [#allocation7], 4
      %s95 = int_to_ptr.vmem [resolvable:$true] %s94
      %s96 = sshll.u32 %s3, 4
      %s97 = int_to_ptr.hbm [resolvable:$true] %s96
      %102 = dma.vmem_to_hbm [thread:$0]  %s95, 256, %s97, [#allocation4], 128, 128, 8
    $region25: #{tpu_custom_call.1} parent=1 // pred_fallthru
      _
    // Predicated region
    $region26: #{tpu_custom_call.1} parent=1 // pred_check
      _
    $region27: #{tpu_custom_call.1} parent=1 // pred_check_branch
      %104 = sbr.rel (0) target = $region29
    $region28: #{tpu_custom_call.1} parent=1 // pred_region
      %106 = dma.done [#allocation4], 256
    $region29: #{tpu_custom_call.1} parent=1 // pred_fallthru
      _
    %107 = vsyncpa [#allocation3], 1
    %108 = vsyncpa [#allocation6], 1
    %109 = vsyncpa [#allocation4], 1

</llo_original>
